<compile_context>
chip_gen: v7x
topology: tpu7x:2x2x1
jax: 0.10.0
libtpu: 0.0.40
codegen_flags: <defaults>
</compile_context>

<pallas_src>
import functools

import jax
import jax.numpy as jnp
from jax.experimental import pallas as pl
from jax.experimental.pallas import tpu as pltpu


_NEG_LARGE = -1e30  # finite "-inf" used to mask padded spatial columns


# ----------------------------------------------------------------------------
# Pallas kernel: one (batch, hw-split, hw-block) tile per grid step.
# ----------------------------------------------------------------------------
def _spatial_gather_kernel(probs_ref, feats_ref, acc_ref, m_ref, l_ref, *,
                           scale, hw, hw_padded, block_t, n_hw):
    h = pl.program_id(2)

    # The (K,C)/(K,1) output blocks are resident across the hw axis, so they
    # double as the online-softmax accumulators.  Init at the first hw block.
    @pl.when(h == 0)
    def _():
        m_ref[...] = jnp.full(m_ref.shape, -jnp.inf, dtype=m_ref.dtype)
        l_ref[...] = jnp.zeros(l_ref.shape, dtype=l_ref.dtype)
        acc_ref[...] = jnp.zeros(acc_ref.shape, dtype=acc_ref.dtype)

    s = probs_ref[...].astype(jnp.float32)                    # (K, T)
    if scale != 1.0:      # static: skip the VPU pass in the scale==1 case
        s = s * jnp.float32(scale)

    # Mask spatial padding (only emitted when padding exists -- static check).
    if hw_padded != hw:
        split = pl.program_id(1)
        base = (split * n_hw + h) * block_t
        col = jax.lax.broadcasted_iota(jnp.int32, s.shape, 1) + base
        s = jnp.where(col < hw, s, _NEG_LARGE)

    m_prev = m_ref[...]                                       # (K, 1)
    m_new = jnp.maximum(m_prev, jnp.max(s, axis=-1, keepdims=True))
    alpha = jnp.exp(m_prev - m_new)                           # (K, 1)
    p = jnp.exp(s - m_new)                                    # (K, T) f32

    l_ref[...] = alpha * l_ref[...] + jnp.sum(p, axis=-1, keepdims=True)

    # Contract over the spatial axis with BOTH operands in feats' native dtype
    # (bf16 -> native MXU mode; no f32 upcast of feats); f32 accumulation.
    pv = jax.lax.dot_general(
        p.astype(feats_ref.dtype), feats_ref[...],
        dimension_numbers=(((1,), (1,)), ((), ())),
        preferred_element_type=jnp.float32)                   # (K, C)

    acc_ref[...] = alpha * acc_ref[...] + pv
    m_ref[...] = m_new


# ----------------------------------------------------------------------------
# Tiling / VMEM heuristics
# ----------------------------------------------------------------------------
def _vmem_capacity_bytes():
    try:
        cap = getattr(pltpu.get_tpu_info(), "vmem_capacity_bytes", None)
        if cap:
            return int(cap)
    except Exception:
        pass
    return 64 * 1024 * 1024   # conservative fallback (v7x per-core VMEM)


def _cdiv(a, b):
    return -(-a // b)


def _select_tiling(hw, c, k, dtype_bytes, hw_splits, block_hw):
    """Pick (T, S, n_hw, hw_padded) for the spatial reduction."""
    vmem_cap = _vmem_capacity_bytes()
    # Double-buffered probs + feats columns should use at most ~1/4 of VMEM.
    per_col = 2 * (c + k) * dtype_bytes
    t = (vmem_cap // 4) // max(per_col, 1)
    # Cap the per-step tile (keeps per-step DMA >> the ~0.35us step overhead
    # without hogging VMEM); 2x larger for 2-byte activations.
    t = min(t, 8192 if dtype_bytes <= 2 else 4096)
    if block_hw is not None:
        t = min(t, int(block_hw))
    t = max(128, (t // 128) * 128)

    n_blocks = _cdiv(hw, t)
    if n_blocks == 1:
        return hw, 1, 1, hw          # single full-extent block, no padding
    s = max(1, min(int(hw_splits), n_blocks))
    n_hw = _cdiv(n_blocks, s)
    return t, s, n_hw, s * n_hw * t


# ----------------------------------------------------------------------------
# Wrapper
# ----------------------------------------------------------------------------
def spatial_gather_forward(feats, probs, scale, *, block_hw=None,
                           hw_splits=None):
    """feats: (B, C, H, W), probs: (B, K, H, W)  ->  (B, C, K, 1)."""
    B, C, H, W = feats.shape
    _, K, _, _ = probs.shape
    HW = H * W

    if hw_splits is None:
        # B == 1 (typical segmentation inference): split the HW reduction so
        # v7x's second TensorCore gets work; the tiny combine below is free.
        hw_splits = 2 if B == 1 else 1

    dtype_bytes = jnp.dtype(feats.dtype).itemsize
    T, S, n_hw, HWp = _select_tiling(HW, C, K, dtype_bytes, hw_splits, block_hw)

    # Free metadata reshapes (no data movement): HW on the 128-lane axis.
    probs_flat = probs.reshape(B, K, HW)
    feats_flat = feats.reshape(B, C, HW)
    if HWp != HW:
        pad = HWp - HW
        probs_flat = jnp.pad(probs_flat, ((0, 0), (0, 0), (0, pad)))
        feats_flat = jnp.pad(feats_flat, ((0, 0), (0, 0), (0, pad)))

    kernel = functools.partial(
        _spatial_gather_kernel, scale=float(scale), hw=HW, hw_padded=HWp,
        block_t=T, n_hw=n_hw)

    # Explicit VMEM budget: double-buffered inputs + resident f32 accumulators.
    vmem_needed = (2 * (C + K) * T * dtype_bytes
                   + 2 * (K * C + 2 * K) * 4
                   + (4 << 20))
    vmem_cap = _vmem_capacity_bytes()
    vmem_limit = int(min(vmem_cap - (8 << 20), max(vmem_needed, 32 << 20)))

    grid_spec = pltpu.PrefetchScalarGridSpec(
        num_scalar_prefetch=0,
        grid=(B, S, n_hw),
        in_specs=[
            pl.BlockSpec((None, K, T), lambda b, s, h: (b, 0, s * n_hw + h)),
            pl.BlockSpec((None, C, T), lambda b, s, h: (b, 0, s * n_hw + h)),
        ],
        out_specs=(
            pl.BlockSpec((None, None, K, C), lambda b, s, h: (b, s, 0, 0)),
            pl.BlockSpec((None, None, K, 1), lambda b, s, h: (b, s, 0, 0)),
            pl.BlockSpec((None, None, K, 1), lambda b, s, h: (b, s, 0, 0)),
        ),
    )

    acc, m, l = pl.pallas_call(
        kernel,
        out_shape=(
            jax.ShapeDtypeStruct((B, S, K, C), jnp.float32),
            jax.ShapeDtypeStruct((B, S, K, 1), jnp.float32),
            jax.ShapeDtypeStruct((B, S, K, 1), jnp.float32),
        ),
        grid_spec=grid_spec,
        compiler_params=pltpu.CompilerParams(
            dimension_semantics=("parallel", "parallel", "arbitrary"),
            vmem_limit_bytes=vmem_limit),
    )(probs_flat, feats_flat)

    # Log-sum-exp combine of the S partial spatial reductions + normalization:
    # tiny (B, S, K, C) arrays, plain-JAX glue.
    m_g = jnp.max(m, axis=1, keepdims=True)                   # (B, 1, K, 1)
    w = jnp.exp(m - m_g)                                      # (B, S, K, 1)
    acc_g = jnp.sum(acc * w, axis=1)                          # (B, K, C)
    l_g = jnp.sum(l * w, axis=1)                              # (B, K, 1)
    ctx = (acc_g / l_g).astype(feats.dtype)                   # (B, K, C)

    # permute(0, 2, 1).unsqueeze(3) of a tiny (B, K, C) array: plain-JAX glue.
    return jnp.transpose(ctx, (0, 2, 1))[..., None]           # (B, C, K, 1)


# ----------------------------------------------------------------------------
# Pure-JAX reference (for correctness check)
# ----------------------------------------------------------------------------
def spatial_gather_reference(feats, probs, scale):
    B, C, H, W = feats.shape
    K = probs.shape[1]
    p = probs.reshape(B, K, H * W).astype(jnp.float32)
    f = jnp.transpose(feats.reshape(B, C, H * W), (0, 2, 1)).astype(jnp.float32)
    p = jax.nn.softmax(scale * p, axis=2)
    ctx = jnp.einsum("bkh,bhc->bkc", p, f)                    # (B, K, C)
    return jnp.transpose(ctx, (0, 2, 1))[..., None]           # (B, C, K, 1)


if __name__ == "__main__":
    key = jax.random.PRNGKey(0)
    kf, kp, kf2, kp2 = jax.random.split(key, 4)

    # --- Test 1: f32, B=2, scale=2, tiled HW -> exercises multi-block
    # online-softmax accumulation (grid = (2, 1, 2)).
    B, C, K, H, W = 2, 32, 8, 16, 16
    feats = jax.random.normal(kf, (B, C, H, W), jnp.float32)
    probs = jax.random.normal(kp, (B, K, H, W), jnp.float32)
    out = jax.block_until_ready(
        spatial_gather_forward(feats, probs, 2.0, block_hw=128))
    ref = jax.block_until_ready(spatial_gather_reference(feats, probs, 2.0))
    assert out.shape == (B, C, K, 1), out.shape
    assert jnp.allclose(out, ref, rtol=1e-5, atol=1e-5), (
        float(jnp.max(jnp.abs(out - ref))))

    # --- Test 2: f32, B=1, non-128-aligned HW (15x17) -> exercises pad+mask
    # and the two-way HW split (v7x second-core path) with the LSE combine.
    B2, C2, K2, H2, W2 = 1, 32, 8, 15, 17
    feats2 = jax.random.normal(kf2, (B2, C2, H2, W2), jnp.float32)
    probs2 = jax.random.normal(kp2, (B2, K2, H2, W2), jnp.float32)
    out2 = jax.block_until_ready(
        spatial_gather_forward(feats2, probs2, 1.0, block_hw=128))
    ref2 = jax.block_until_ready(spatial_gather_reference(feats2, probs2, 1.0))
    assert out2.shape == (B2, C2, K2, 1), out2.shape
    assert jnp.allclose(out2, ref2, rtol=1e-5, atol=1e-5), (
        float(jnp.max(jnp.abs(out2 - ref2))))

    # --- Test 3: bf16 activations (native bf16 MXU path) vs f32 reference,
    # with the standard flash-attention precision tolerance.
    feats_bf = feats.astype(jnp.bfloat16)
    probs_bf = probs.astype(jnp.bfloat16)
    out3 = jax.block_until_ready(
        spatial_gather_forward(feats_bf, probs_bf, 1.0, block_hw=128))
    ref3 = jax.block_until_ready(
        spatial_gather_reference(feats_bf.astype(jnp.float32),
                                 probs_bf.astype(jnp.float32), 1.0))
    assert out3.shape == (B, C, K, 1), out3.shape
    assert jnp.allclose(out3.astype(jnp.float32), ref3, rtol=3e-2, atol=3e-2), (
        float(jnp.max(jnp.abs(out3.astype(jnp.float32) - ref3))))

    print("KERNEL_OK")
</pallas_src>

<mosaic_0001>
module attributes {stable_mosaic.version = 11 : i64} {
  func.func @_spatial_gather_kernel(%arg0: i32, %arg1: i32, %arg2: i32, %arg3: memref<1x8x128xf32, #tpu.memory_space<vmem>>, %arg4: memref<1x32x128xf32, #tpu.memory_space<vmem>>, %arg5: memref<1x1x8x32xf32, #tpu.memory_space<vmem>>, %arg6: memref<1x1x8x1xf32, #tpu.memory_space<vmem>>, %arg7: memref<1x1x8x1xf32, #tpu.memory_space<vmem>>) attributes {dimension_semantics = [#tpu.dimension_semantics<parallel>, #tpu.dimension_semantics<parallel>, #tpu.dimension_semantics<arbitrary>], iteration_bounds = array<i64: 2, 1, 2>, scalar_prefetch = 0 : i64, scratch_operands = 0 : i64, tpu.core_type = #tpu.core_type<tc>, window_params = [{transform_indices = @transform_0, window_bounds = array<i64: 1, 8, 128>}, {transform_indices = @transform_1, window_bounds = array<i64: 1, 32, 128>}, {transform_indices = @transform_2, window_bounds = array<i64: 1, 1, 8, 32>}, {transform_indices = @transform_3, window_bounds = array<i64: 1, 1, 8, 1>}, {transform_indices = @transform_4, window_bounds = array<i64: 1, 1, 8, 1>}]} {
    %c0_i32 = arith.constant 0 : i32
    %0 = arith.cmpi eq, %arg2, %c0_i32 : i32
    %1 = arith.extui %0 : i1 to i32
    %c0_i32_0 = arith.constant 0 : i32
    %2 = arith.cmpi ne, %1, %c0_i32_0 : i32
    scf.if %2 {
      %cst_33 = arith.constant 0xFF800000 : f32
      %40 = vector.broadcast %cst_33 : f32 to vector<8x1xf32>
      %c0_34 = arith.constant 0 : index
      %c0_35 = arith.constant 0 : index
      %c0_36 = arith.constant 0 : index
      %c0_37 = arith.constant 0 : index
      %41 = vector.load %arg6[%c0_34, %c0_35, %c0_36, %c0_37] : memref<1x1x8x1xf32, #tpu.memory_space<vmem>>, vector<1x1x8x1xf32>
      %42 = vector.shape_cast %41 : vector<1x1x8x1xf32> to vector<8x1xf32>
      %43 = vector.shape_cast %40 : vector<8x1xf32> to vector<1x1x8x1xf32>
      tpu.vector_store %arg6[%c0_34, %c0_35, %c0_36, %c0_37], %43 {strides = array<i32>} : memref<1x1x8x1xf32, #tpu.memory_space<vmem>>, vector<1x1x8x1xf32>,
      %cst_38 = arith.constant 0.000000e+00 : f32
      %44 = vector.broadcast %cst_38 : f32 to vector<8x1xf32>
      %c0_39 = arith.constant 0 : index
      %c0_40 = arith.constant 0 : index
      %c0_41 = arith.constant 0 : index
      %c0_42 = arith.constant 0 : index
      %45 = vector.load %arg7[%c0_39, %c0_40, %c0_41, %c0_42] : memref<1x1x8x1xf32, #tpu.memory_space<vmem>>, vector<1x1x8x1xf32>
      %46 = vector.shape_cast %45 : vector<1x1x8x1xf32> to vector<8x1xf32>
      %47 = vector.shape_cast %44 : vector<8x1xf32> to vector<1x1x8x1xf32>
      tpu.vector_store %arg7[%c0_39, %c0_40, %c0_41, %c0_42], %47 {strides = array<i32>} : memref<1x1x8x1xf32, #tpu.memory_space<vmem>>, vector<1x1x8x1xf32>,
      %cst_43 = arith.constant 0.000000e+00 : f32
      %48 = vector.broadcast %cst_43 : f32 to vector<8x32xf32>
      %c0_44 = arith.constant 0 : index
      %c0_45 = arith.constant 0 : index
      %c0_46 = arith.constant 0 : index
      %c0_47 = arith.constant 0 : index
      %49 = vector.load %arg5[%c0_44, %c0_45, %c0_46, %c0_47] : memref<1x1x8x32xf32, #tpu.memory_space<vmem>>, vector<1x1x8x32xf32>
      %50 = vector.shape_cast %49 : vector<1x1x8x32xf32> to vector<8x32xf32>
      %51 = vector.shape_cast %48 : vector<8x32xf32> to vector<1x1x8x32xf32>
      tpu.vector_store %arg5[%c0_44, %c0_45, %c0_46, %c0_47], %51 {strides = array<i32>} : memref<1x1x8x32xf32, #tpu.memory_space<vmem>>, vector<1x1x8x32xf32>,
    } else {
    }
    %c0 = arith.constant 0 : index
    %c0_1 = arith.constant 0 : index
    %c0_2 = arith.constant 0 : index
    %3 = vector.load %arg3[%c0, %c0_1, %c0_2] : memref<1x8x128xf32, #tpu.memory_space<vmem>>, vector<1x8x128xf32>
    %4 = vector.shape_cast %3 : vector<1x8x128xf32> to vector<8x128xf32>
    %cst = arith.constant 2.000000e+00 : f32
    %5 = vector.broadcast %cst : f32 to vector<8x128xf32>
    %6 = arith.mulf %4, %5 : vector<8x128xf32>
    %c0_3 = arith.constant 0 : index
    %c0_4 = arith.constant 0 : index
    %c0_5 = arith.constant 0 : index
    %c0_6 = arith.constant 0 : index
    %7 = vector.load %arg6[%c0_3, %c0_4, %c0_5, %c0_6] : memref<1x1x8x1xf32, #tpu.memory_space<vmem>>, vector<1x1x8x1xf32>
    %8 = vector.shape_cast %7 : vector<1x1x8x1xf32> to vector<8x1xf32>
    %cst_7 = arith.constant dense<0xFF800000> : vector<8xf32>
    %9 = vector.multi_reduction <maximumf>, %6, %cst_7 [1] : vector<8x128xf32> to vector<8xf32>
    %10 = vector.shape_cast %9 : vector<8xf32> to vector<8x1xf32>
    %11 = arith.maximumf %8, %10 : vector<8x1xf32>
    %12 = arith.subf %8, %11 : vector<8x1xf32>
    %13 = math.exp %12 : vector<8x1xf32>
    %14 = vector.broadcast %11 : vector<8x1xf32> to vector<8x128xf32>
    %15 = arith.subf %6, %14 : vector<8x128xf32>
    %16 = math.exp %15 : vector<8x128xf32>
    %c0_8 = arith.constant 0 : index
    %c0_9 = arith.constant 0 : index
    %c0_10 = arith.constant 0 : index
    %c0_11 = arith.constant 0 : index
    %17 = vector.load %arg7[%c0_8, %c0_9, %c0_10, %c0_11] : memref<1x1x8x1xf32, #tpu.memory_space<vmem>>, vector<1x1x8x1xf32>
    %18 = vector.shape_cast %17 : vector<1x1x8x1xf32> to vector<8x1xf32>
    %19 = arith.mulf %13, %18 : vector<8x1xf32>
    %cst_12 = arith.constant dense<0.000000e+00> : vector<8xf32>
    %20 = vector.multi_reduction <add>, %16, %cst_12 [1] : vector<8x128xf32> to vector<8xf32>
    %21 = vector.shape_cast %20 : vector<8xf32> to vector<8x1xf32>
    %22 = arith.addf %19, %21 : vector<8x1xf32>
    %c0_13 = arith.constant 0 : index
    %c0_14 = arith.constant 0 : index
    %c0_15 = arith.constant 0 : index
    %c0_16 = arith.constant 0 : index
    %23 = vector.load %arg7[%c0_13, %c0_14, %c0_15, %c0_16] : memref<1x1x8x1xf32, #tpu.memory_space<vmem>>, vector<1x1x8x1xf32>
    %24 = vector.shape_cast %23 : vector<1x1x8x1xf32> to vector<8x1xf32>
    %25 = vector.shape_cast %22 : vector<8x1xf32> to vector<1x1x8x1xf32>
    tpu.vector_store %arg7[%c0_13, %c0_14, %c0_15, %c0_16], %25 {strides = array<i32>} : memref<1x1x8x1xf32, #tpu.memory_space<vmem>>, vector<1x1x8x1xf32>,
    %c0_17 = arith.constant 0 : index
    %c0_18 = arith.constant 0 : index
    %c0_19 = arith.constant 0 : index
    %26 = vector.load %arg4[%c0_17, %c0_18, %c0_19] : memref<1x32x128xf32, #tpu.memory_space<vmem>>, vector<1x32x128xf32>
    %27 = vector.shape_cast %26 : vector<1x32x128xf32> to vector<32x128xf32>
    %cst_20 = arith.constant dense<0.000000e+00> : vector<8x32xf32>
    %28 = tpu.matmul %16, %27, %cst_20 {dimension_numbers = #tpu.dot_dimension_numbers<[1], [1], [0], [0], [0, 0, 1, 0], [], []>} : vector<8x128xf32>, vector<32x128xf32>, vector<8x32xf32> -> vector<8x32xf32>
    %c0_21 = arith.constant 0 : index
    %c0_22 = arith.constant 0 : index
    %c0_23 = arith.constant 0 : index
    %c0_24 = arith.constant 0 : index
    %29 = vector.load %arg5[%c0_21, %c0_22, %c0_23, %c0_24] : memref<1x1x8x32xf32, #tpu.memory_space<vmem>>, vector<1x1x8x32xf32>
    %30 = vector.shape_cast %29 : vector<1x1x8x32xf32> to vector<8x32xf32>
    %31 = vector.broadcast %13 : vector<8x1xf32> to vector<8x32xf32>
    %32 = arith.mulf %31, %30 : vector<8x32xf32>
    %33 = arith.addf %32, %28 : vector<8x32xf32>
    %c0_25 = arith.constant 0 : index
    %c0_26 = arith.constant 0 : index
    %c0_27 = arith.constant 0 : index
    %c0_28 = arith.constant 0 : index
    %34 = vector.load %arg5[%c0_25, %c0_26, %c0_27, %c0_28] : memref<1x1x8x32xf32, #tpu.memory_space<vmem>>, vector<1x1x8x32xf32>
    %35 = vector.shape_cast %34 : vector<1x1x8x32xf32> to vector<8x32xf32>
    %36 = vector.shape_cast %33 : vector<8x32xf32> to vector<1x1x8x32xf32>
    tpu.vector_store %arg5[%c0_25, %c0_26, %c0_27, %c0_28], %36 {strides = array<i32>} : memref<1x1x8x32xf32, #tpu.memory_space<vmem>>, vector<1x1x8x32xf32>,
    %c0_29 = arith.constant 0 : index
    %c0_30 = arith.constant 0 : index
    %c0_31 = arith.constant 0 : index
    %c0_32 = arith.constant 0 : index
    %37 = vector.load %arg6[%c0_29, %c0_30, %c0_31, %c0_32] : memref<1x1x8x1xf32, #tpu.memory_space<vmem>>, vector<1x1x8x1xf32>
    %38 = vector.shape_cast %37 : vector<1x1x8x1xf32> to vector<8x1xf32>
    %39 = vector.shape_cast %11 : vector<8x1xf32> to vector<1x1x8x1xf32>
    tpu.vector_store %arg6[%c0_29, %c0_30, %c0_31, %c0_32], %39 {strides = array<i32>} : memref<1x1x8x1xf32, #tpu.memory_space<vmem>>, vector<1x1x8x1xf32>,
    return
  }
  func.func @transform_0(%arg0: i32, %arg1: i32, %arg2: i32) -> (i32, i32, i32) {
    %c2_i32 = arith.constant 2 : i32
    %0 = arith.muli %arg1, %c2_i32 : i32
    %1 = arith.addi %0, %arg2 : i32
    %c0_i32 = arith.constant 0 : i32
    %c0_i32_0 = arith.constant 0 : i32
    return %arg0, %c0_i32, %1 : i32, i32, i32
  }
  func.func @transform_1(%arg0: i32, %arg1: i32, %arg2: i32) -> (i32, i32, i32) {
    %c2_i32 = arith.constant 2 : i32
    %0 = arith.muli %arg1, %c2_i32 : i32
    %1 = arith.addi %0, %arg2 : i32
    %c0_i32 = arith.constant 0 : i32
    %c0_i32_0 = arith.constant 0 : i32
    return %arg0, %c0_i32, %1 : i32, i32, i32
  }
  func.func @transform_2(%arg0: i32, %arg1: i32, %arg2: i32) -> (i32, i32, i32, i32) {
    %c0_i32 = arith.constant 0 : i32
    %c0_i32_0 = arith.constant 0 : i32
    %c0_i32_1 = arith.constant 0 : i32
    return %arg0, %arg1, %c0_i32, %c0_i32_0 : i32, i32, i32, i32
  }
  func.func @transform_3(%arg0: i32, %arg1: i32, %arg2: i32) -> (i32, i32, i32, i32) {
    %c0_i32 = arith.constant 0 : i32
    %c0_i32_0 = arith.constant 0 : i32
    %c0_i32_1 = arith.constant 0 : i32
    return %arg0, %arg1, %c0_i32, %c0_i32_0 : i32, i32, i32, i32
  }
  func.func @transform_4(%arg0: i32, %arg1: i32, %arg2: i32) -> (i32, i32, i32, i32) {
    %c0_i32 = arith.constant 0 : i32
    %c0_i32_0 = arith.constant 0 : i32
    %c0_i32_1 = arith.constant 0 : i32
    return %arg0, %arg1, %c0_i32, %c0_i32_0 : i32, i32, i32, i32
  }
}

</mosaic_0001>

<llo_original>
// kernel: tpu_custom_call.1
$region0: #{tpu_custom_call.1}
  #allocation0 [shape = 'u32[]', space=smem, size = 0x4, offset = 0x4, fixed_abs, tag = 'smem constant byte address 0x4 - core index']
  #allocation1 [shape = 'u32[144,128]{1,0:T(1,128)}', space=vmem, size = 0x12000, scoped, tag = 'internal scratch']
  %s0 = inlined_call_operand.hbm [shape: f32[2,8,256], index: 0, kind: input, shape index: {}]
  %s1 = inlined_call_operand.hbm [shape: f32[2,32,256], index: 1, kind: input, shape index: {}]
  %s2 = inlined_call_operand.hbm [shape: f32[2,1,8,32], index: 2, kind: output, shape index: {0}]
  %s3 = inlined_call_operand.vmem [shape: f32[2,1,8,1], index: 3, kind: output, shape index: {1}]
  %s4 = inlined_call_operand.vmem [shape: f32[2,1,8,1], index: 4, kind: output, shape index: {2}]
  %5 = xla_tuple %s2, %s3, %s4
  %s6 = sld [smem:[#allocation0]]
  $region69: #{tpu_custom_call.1} parent=0
    _
  %s8 = ssub.s32 1, %s6
  %s9 = scalar_select 0, %s8, %s6
  $region1: #{tpu_custom_call.1} parent=0
    #allocation2 [shape = 'u8[8192]{0}', space=vmem, size = 0x2000, scoped, tag = 'input window, operand 0']
    #allocation3 [shape = 's32[2]{0}', space=sflag, size = 0x8, scoped, tag = 'scoped memory for tpu_custom_call.1']
    #allocation4 [shape = 's32[2]{0}', space=sflag, size = 0x8, scoped, tag = 'scoped memory for tpu_custom_call.1']
    #allocation5 [shape = 'u8[32768]{0}', space=vmem, size = 0x8000, scoped, tag = 'input window, operand 1']
    #allocation6 [shape = 's32[2]{0}', space=sflag, size = 0x8, scoped, tag = 'scoped memory for tpu_custom_call.1']
    #allocation7 [shape = 'u8[8192]{0}', space=vmem, size = 0x2000, scoped, tag = 'output window, operand 0']
    %10 = vsyncpa [#allocation3], 0
    %s11 = scalar_lea.sflag [#allocation3], 1
    %12 = vsyncpa %s11, 0
    %13 = vsyncpa [#allocation6], 0
    %s14 = scalar_lea.sflag [#allocation6], 1
    %15 = vsyncpa %s14, 0
    %16 = vsyncpa [#allocation4], 0
    %s17 = scalar_lea.sflag [#allocation4], 1
    %18 = vsyncpa %s17, 0
    loop: start=0, step=1, limit=6
    $region2: #{tpu_custom_call.1} parent=1 // loop_pre_header
      _
    $region3: #{tpu_custom_call.1} parent=1 // loop_header
      %s20 = sphi 0, %s24
      %p21 = scmp.ge.s32.totalorder %s20, 6
      %s27 = sphi 0, %s46
      %s28 = sphi 0, %s42
      %s29 = sphi 0, %s38
      %s30 = sphi 0, %s27
      %s31 = sphi 0, %s28
      %s32 = sphi 0, %s29
      %s33 = sphi 0, %s30
      %s34 = sphi 0, %s31
      %s35 = sphi 0, %s32
      %s55 = sphi 0, %s57
      %s58 = sphi 0, %s55
      %s59 = sphi 0, %s58
      %s75 = sphi 0, %s59
      %s87 = sphi 0, %s89
      %s90 = sphi 0, %s87
      %s91 = sphi 0, %s90
      %s107 = sphi 0, %s91
      %s115 = sphi 0, %s117
      %s118 = sphi 0, %s115
      %s119 = sphi 0, %s118
      %s135 = sphi 0, %s119
      %s143 = sphi 0, %s145
      %s146 = sphi 0, %s143
      %s147 = sphi 0, %s146
      %s163 = sphi 0, %s147
      %s171 = sphi 0, %s173
      %s174 = sphi 0, %s171
      %s175 = sphi 0, %s174
      %s191 = sphi 0, %s175
    $region4: #{tpu_custom_call.1} parent=1 // loop_header_branch
      %23 = sbr.rel (%p21) target = $region8
    $region5: #{tpu_custom_call.1} parent=1 // loop_body
      %s25 = ssub.s32 %s20, 1
      %s26 = ssub.s32 %s20, 2
      %s36 = sadd.s32 1, %s29
      %p37 = scmp.ge.s32.totalorder %s36, 2
      %s38 = scalar_select %p37, 0, %s36
      %s39 = sadd.s32 1, %s28
      %s40 = scalar_select %p37, %s39, %s28
      %p41 = scmp.ge.s32.totalorder %s40, 1
      %s42 = scalar_select %p41, 0, %s40
      %s43 = sadd.s32 1, %s27
      %s44 = scalar_select %p41, %s43, %s27
      %p45 = scmp.ge.s32.totalorder %s44, 2
      %s46 = scalar_select %p45, 0, %s44
      %s47 = smul.u32 %s28, 2
      %s48 = sadd.s32 %s47, %s29
      %s49 = smul.u32 %s42, 2
      %s50 = sadd.s32 %s49, %s38
      %s51 = ssub.s32 %s27, %s46
      %s52 = ssub.s32 %s48, %s50
      %s53 = sor.u32 %s51, %s52
      %p54 = scmp.eq.s32.totalorder %s53, 0
      %s56 = sadd.s32 %s55, 1
      %s57 = scalar_select %p54, %s55, %s56
      %p60 = pneg %p54
      %p61 = scmp.eq.s32.totalorder %s20, 3
      %p62 = por %p60, %p61
      %p63 = scmp.ne.s32.totalorder %s55, %s58
      %p64 = scmp.eq.s32.totalorder %s20, 0
      %p65 = por %p63, %p64
      %p66 = scmp.ne.s32.totalorder %s55, %s58
      %p67 = scmp.eq.s32.totalorder %s25, 3
      %p68 = por %p66, %p67
      %p69 = scmp.ne.s32.totalorder %s58, %s59
      %p70 = scmp.eq.s32.totalorder %s25, 0
      %p71 = por %p69, %p70
      %p72 = scmp.ne.s32.totalorder %s58, %s59
      %p73 = scmp.eq.s32.totalorder %s26, 3
      %p74 = por %p72, %p73
      %p76 = scmp.ne.s32.totalorder %s59, %s75
      %p77 = scmp.eq.s32.totalorder %s26, 0
      %p78 = por %p76, %p77
      %s79 = smul.u32 %s28, 2
      %s80 = sadd.s32 %s79, %s29
      %s81 = smul.u32 %s42, 2
      %s82 = sadd.s32 %s81, %s38
      %s83 = ssub.s32 %s27, %s46
      %s84 = ssub.s32 %s80, %s82
      %s85 = sor.u32 %s83, %s84
      %p86 = scmp.eq.s32.totalorder %s85, 0
      %s88 = sadd.s32 %s87, 1
      %s89 = scalar_select %p86, %s87, %s88
      %p92 = pneg %p86
      %p93 = scmp.eq.s32.totalorder %s20, 3
      %p94 = por %p92, %p93
      %p95 = scmp.ne.s32.totalorder %s87, %s90
      %p96 = scmp.eq.s32.totalorder %s20, 0
      %p97 = por %p95, %p96
      %p98 = scmp.ne.s32.totalorder %s87, %s90
      %p99 = scmp.eq.s32.totalorder %s25, 3
      %p100 = por %p98, %p99
      %p101 = scmp.ne.s32.totalorder %s90, %s91
      %p102 = scmp.eq.s32.totalorder %s25, 0
      %p103 = por %p101, %p102
      %p104 = scmp.ne.s32.totalorder %s90, %s91
      %p105 = scmp.eq.s32.totalorder %s26, 3
      %p106 = por %p104, %p105
      %p108 = scmp.ne.s32.totalorder %s91, %s107
      %p109 = scmp.eq.s32.totalorder %s26, 0
      %p110 = por %p108, %p109
      %s111 = ssub.s32 %s27, %s46
      %s112 = ssub.s32 %s28, %s42
      %s113 = sor.u32 %s111, %s112
      %p114 = scmp.eq.s32.totalorder %s113, 0
      %s116 = sadd.s32 %s115, 1
      %s117 = scalar_select %p114, %s115, %s116
      %p120 = pneg %p114
      %p121 = scmp.eq.s32.totalorder %s20, 3
      %p122 = por %p120, %p121
      %p123 = scmp.ne.s32.totalorder %s115, %s118
      %p124 = scmp.eq.s32.totalorder %s20, 0
      %p125 = por %p123, %p124
      %p126 = scmp.ne.s32.totalorder %s115, %s118
      %p127 = scmp.eq.s32.totalorder %s25, 3
      %p128 = por %p126, %p127
      %p129 = scmp.ne.s32.totalorder %s118, %s119
      %p130 = scmp.eq.s32.totalorder %s25, 0
      %p131 = por %p129, %p130
      %p132 = scmp.ne.s32.totalorder %s118, %s119
      %p133 = scmp.eq.s32.totalorder %s26, 3
      %p134 = por %p132, %p133
      %p136 = scmp.ne.s32.totalorder %s119, %s135
      %p137 = scmp.eq.s32.totalorder %s26, 0
      %p138 = por %p136, %p137
      %s139 = ssub.s32 %s27, %s46
      %s140 = ssub.s32 %s28, %s42
      %s141 = sor.u32 %s139, %s140
      %p142 = scmp.eq.s32.totalorder %s141, 0
      %s144 = sadd.s32 %s143, 1
      %s145 = scalar_select %p142, %s143, %s144
      %p148 = pneg %p142
      %p149 = scmp.eq.s32.totalorder %s20, 3
      %p150 = por %p148, %p149
      %p151 = scmp.ne.s32.totalorder %s143, %s146
      %p152 = scmp.eq.s32.totalorder %s20, 0
      %p153 = por %p151, %p152
      %p154 = scmp.ne.s32.totalorder %s143, %s146
      %p155 = scmp.eq.s32.totalorder %s25, 3
      %p156 = por %p154, %p155
      %p157 = scmp.ne.s32.totalorder %s146, %s147
      %p158 = scmp.eq.s32.totalorder %s25, 0
      %p159 = por %p157, %p158
      %p160 = scmp.ne.s32.totalorder %s146, %s147
      %p161 = scmp.eq.s32.totalorder %s26, 3
      %p162 = por %p160, %p161
      %p164 = scmp.ne.s32.totalorder %s147, %s163
      %p165 = scmp.eq.s32.totalorder %s26, 0
      %p166 = por %p164, %p165
      %s167 = ssub.s32 %s27, %s46
      %s168 = ssub.s32 %s28, %s42
      %s169 = sor.u32 %s167, %s168
      %p170 = scmp.eq.s32.totalorder %s169, 0
      %s172 = sadd.s32 %s171, 1
      %s173 = scalar_select %p170, %s171, %s172
      %p176 = pneg %p170
      %p177 = scmp.eq.s32.totalorder %s20, 3
      %p178 = por %p176, %p177
      %p179 = scmp.ne.s32.totalorder %s171, %s174
      %p180 = scmp.eq.s32.totalorder %s20, 0
      %p181 = por %p179, %p180
      %p182 = scmp.ne.s32.totalorder %s171, %s174
      %p183 = scmp.eq.s32.totalorder %s25, 3
      %p184 = por %p182, %p183
      %p185 = scmp.ne.s32.totalorder %s174, %s175
      %p186 = scmp.eq.s32.totalorder %s25, 0
      %p187 = por %p185, %p186
      %p188 = scmp.ne.s32.totalorder %s174, %s175
      %p189 = scmp.eq.s32.totalorder %s26, 3
      %p190 = por %p188, %p189
      %p192 = scmp.ne.s32.totalorder %s175, %s191
      %p193 = scmp.eq.s32.totalorder %s26, 0
      %p194 = por %p192, %p193
      %p195 = scmp.le.s32.totalorder 1, %s20
      %p196 = scmp.lt.s32.totalorder %s20, 5
      %p197 = pnand %p195, %p196
      %p198 = pneg %p197
      // Predicated region
      $region9: #{tpu_custom_call.1} parent=5 // pred_check
        _
      $region10: #{tpu_custom_call.1} parent=5 // pred_check_branch
        %200 = sbr.rel (%p197) target = $region12
      $region11: #{tpu_custom_call.1} parent=5 // pred_region
        %s201 = ssub.s32 %s20, 1
      $region12: #{tpu_custom_call.1} parent=5 // pred_fallthru
        _
      %p202 = scmp.lt.s32.totalorder %s20, 4
      // Predicated region
      $region13: #{tpu_custom_call.1} parent=5 // pred_check
        %p203 = pneg %p202
      $region14: #{tpu_custom_call.1} parent=5 // pred_check_branch
        %205 = sbr.rel (%p203) target = $region16
      $region15: #{tpu_custom_call.1} parent=5 // pred_region
        // Predicated region
        $region17: #{tpu_custom_call.1} parent=15 // pred_check
          %p206 = pneg %p65
        $region18: #{tpu_custom_call.1} parent=15 // pred_check_branch
          %208 = sbr.rel (%p206) target = $region20
        $region19: #{tpu_custom_call.1} parent=15 // pred_region
          %s209 = sand.u32 %s55, 1
          %s210 = scalar_lea.sflag [#allocation3], %s209
          %s211 = sand.u32 %s55, 1
          %s212 = smul.addr %s211, 8
          %s213 = scalar_lea.vmem [#allocation2], %s212
          %s214 = smul.u32 %s28, 2
          %s215 = sadd.s32 %s214, %s29
          %s217 = ssub.s32 128, 128
          %218 = vsyncadd %s210, %s217
          %s219 = smul.addr %s27, 2
          %s220 = sadd.s32 %s215, %s219
          %s221 = smul.addr %s220, 128
          %s222 = scalar_lea.hbm %s0, %s221
          %s224 = sshll.u32 %s213, 4
          %s225 = int_to_ptr.vmem [resolvable:$true] %s224
          %227 = dma.hbm_to_vmem [thread:$0]  %s222, 128, %s225, %s210
        $region20: #{tpu_custom_call.1} parent=15 // pred_fallthru
          _
        // Predicated region
        $region21: #{tpu_custom_call.1} parent=15 // pred_check
          %p228 = pneg %p97
        $region22: #{tpu_custom_call.1} parent=15 // pred_check_branch
          %230 = sbr.rel (%p228) target = $region24
        $region23: #{tpu_custom_call.1} parent=15 // pred_region
          %s231 = sand.u32 %s87, 1
          %s232 = scalar_lea.sflag [#allocation6], %s231
          %s233 = sand.u32 %s87, 1
          %s234 = smul.addr %s233, 32
          %s235 = scalar_lea.vmem [#allocation5], %s234
          %s236 = smul.u32 %s28, 2
          %s237 = sadd.s32 %s236, %s29
          %s239 = ssub.s32 512, 512
          %240 = vsyncadd %s232, %s239
          %s241 = smul.addr %s27, 8
          %s242 = sadd.s32 %s237, %s241
          %s243 = smul.addr %s242, 128
          %s244 = scalar_lea.hbm %s1, %s243
          %s245 = sshll.u32 %s235, 4
          %s246 = int_to_ptr.vmem [resolvable:$true] %s245
          %251 = dma.hbm_to_vmem [thread:$0]  %s244, 512, %s246, %s232, 256, 128, 8
        $region24: #{tpu_custom_call.1} parent=15 // pred_fallthru
          _
      $region16: #{tpu_custom_call.1} parent=5 // pred_fallthru
        _
      %p252 = scmp.le.s32.totalorder 1, %s20
      %p253 = scmp.lt.s32.totalorder %s20, 5
      %p254 = pnand %p252, %p253
      %p255 = pneg %p254
      // Predicated region
      $region25: #{tpu_custom_call.1} parent=5 // pred_check
        _
      $region26: #{tpu_custom_call.1} parent=5 // pred_check_branch
        %257 = sbr.rel (%p254) target = $region28
      $region27: #{tpu_custom_call.1} parent=5 // pred_region
        %s258 = ssub.s32 %s20, 1
        %s259 = sand.u32 %s58, 1
        %s260 = scalar_lea.sflag [#allocation3], %s259
        %s261 = sand.u32 %s58, 1
        %s262 = smul.addr %s261, 8
        %s263 = scalar_lea.vmem [#allocation2], %s262
        // Predicated region
        $region29: #{tpu_custom_call.1} parent=27 // pred_check
          %p264 = pneg %p71
        $region30: #{tpu_custom_call.1} parent=27 // pred_check_branch
          %266 = sbr.rel (%p264) target = $region32
        $region31: #{tpu_custom_call.1} parent=27 // pred_region
          %267 = dma.done %s260, 128
        $region32: #{tpu_custom_call.1} parent=27 // pred_fallthru
          _
        %s268 = sand.u32 %s90, 1
        %s269 = scalar_lea.sflag [#allocation6], %s268
        %s270 = sand.u32 %s90, 1
        %s271 = smul.addr %s270, 32
        %s272 = scalar_lea.vmem [#allocation5], %s271
        // Predicated region
        $region33: #{tpu_custom_call.1} parent=27 // pred_check
          %p273 = pneg %p103
        $region34: #{tpu_custom_call.1} parent=27 // pred_check_branch
          %275 = sbr.rel (%p273) target = $region36
        $region35: #{tpu_custom_call.1} parent=27 // pred_region
          %276 = dma.done %s269, 512
        $region36: #{tpu_custom_call.1} parent=27 // pred_fallthru
          _
        %s277 = sand.u32 %s58, 1
        %s278 = scalar_lea.sflag [#allocation3], %s277
        %s279 = sand.u32 %s58, 1
        %s280 = smul.addr %s279, 8
        %s281 = scalar_lea.vmem [#allocation2], %s280
        %p282 = pneg %p71
        %p283 = pneg %p68
        %s284 = sand.u32 %s90, 1
        %s285 = scalar_lea.sflag [#allocation6], %s284
        %s286 = sand.u32 %s90, 1
        %s287 = smul.addr %s286, 32
        %s288 = scalar_lea.vmem [#allocation5], %s287
        %p289 = pneg %p103
        %p290 = pneg %p100
        %p291 = pneg %p131
        %p292 = pneg %p128
        %s293 = sand.u32 %s118, 1
        %s294 = scalar_lea.sflag [#allocation4], %s293
        %s295 = sand.u32 %s118, 1
        %s296 = smul.addr %s295, 8
        %s297 = scalar_lea.vmem [#allocation7], %s296
        %p298 = pneg %p159
        %p299 = pneg %p156
        %p300 = scmp.lt.s32.totalorder %s30, 1
        %s301 = scalar_select %p300, %s30, 1
        %p302 = scmp.lt.s32.totalorder %s31, 0
        %s303 = scalar_select %p302, %s31, 0
        %s304 = sadd.s32 %s303, %s301
        %s305 = smul.addr %s304, 8
        %s306 = scalar_lea.vmem %s3, %s305
        %p307 = pneg %p187
        %p308 = pneg %p184
        %p309 = scmp.lt.s32.totalorder %s30, 1
        %s310 = scalar_select %p309, %s30, 1
        %p311 = scmp.lt.s32.totalorder %s31, 0
        %s312 = scalar_select %p311, %s31, 0
        %s313 = sadd.s32 %s312, %s310
        %s314 = smul.addr %s313, 8
        %s315 = scalar_lea.vmem %s4, %s314
        %s316 = smul.u32 %s31, 2
        %s317 = sadd.s32 %s316, %s32
        %s318 = smul.u32 %s31, 2
        %s319 = sadd.s32 %s318, %s32
        %p320 = scmp.lt.s32.totalorder %s30, 1
        %s321 = scalar_select %p320, %s30, 1
        %p322 = scmp.lt.s32.totalorder %s31, 0
        %s323 = scalar_select %p322, %s31, 0
        %s324 = sadd.s32 %s323, %s321
        %s325 = smul.addr %s324, 8
        %s326 = scalar_lea.vmem %s3, %s325
        %p327 = scmp.lt.s32.totalorder %s30, 1
        %s328 = scalar_select %p327, %s30, 1
        %p329 = scmp.lt.s32.totalorder %s31, 0
        %s330 = scalar_select %p329, %s31, 0
        %s331 = sadd.s32 %s330, %s328
        %s332 = smul.addr %s331, 8
        %s333 = scalar_lea.vmem %s4, %s332
        %p334 = scmp.eq.s32.totalorder %s32, 0
        // Predicated region
        $region37: #{tpu_custom_call.1} parent=27 // pred_check
          %p335 = pneg %p334
        $region38: #{tpu_custom_call.1} parent=27 // pred_check_branch
          %337 = sbr.rel (%p335) target = $region40
        $region39: #{tpu_custom_call.1} parent=27 // pred_region
          %vm338 = vcmask 7168
          %339 = vst.msk [vmem:[%s326] sm:$0xff] %vm338, -inf
          %340 = vst.msk [vmem:[%s333] sm:$0xff] %vm338, 0.0
          %vm341 = vcmask 261120
          %342 = vst.msk [vmem:[%s297] sm:$0xff] %vm341, 0.0
        $region40: #{tpu_custom_call.1} parent=27 // pred_fallthru
          _
        %v343 = vld [vmem:[%s263] sm:$0xff]
        %v344 = vmul.f32 %v343, 2.0
        %v345 = vld [vmem:[%s326] sm:$0xff]
        %346 = vmax.xlane.f32.xlu0 %v344
        %v347 = vpop.xlane.xlu0 %346
        %v348 = vmax.f32 %v345, %v347
        %v349 = vsub.f32 %v345, %v348
        %v350 = vmul.f32 %v349, 1.442695
        %v351 = vpow.pop %v350
        %353 = vset.pattern.permute.xlu0 0
        %354 = vperm.xlu0 %353, %v348
        %v355 = vpop.permute.xlu0 %354
        %v357 = vsub.f32 %v344, %v355
        %v358 = vmul.f32 %v357, 1.442695
        %v359 = vpow.pop %v358
        %v360 = vld [vmem:[%s333] sm:$0xff]
        %v361 = vmul.f32 %v351, %v360
        %362 = vadd.xlane.f32.xlu0 %v359
        %v363 = vpop.xlane.xlu0 %362
        %v364 = vadd.f32 %v361, %v363
        %vm365 = vcmask 7168
        %366 = vst.msk [vmem:[%s333] sm:$0xff] %vm365, %v364
        %v367 = vld [vmem:[%s272] sm:$0xff]
        %v368 = vld [vmem:[%s272 + $0x8] sm:$0xff]
        %v369 = vld [vmem:[%s272 + $0x10] sm:$0xff]
        %v370 = vld [vmem:[%s272 + $0x18] sm:$0xff]
        %371 = vmatprep.subr.mxu0 0.0
        %372 = vmatpush1.xpose.msra.mxu0 %v367
        %373 = vmatprep.subr.mxu0 0.0
        %374 = vmatpush1.xpose.msra.mxu0 %v368
        %375 = vmatprep.subr.mxu0 0.0
        %376 = vmatpush1.xpose.msra.mxu0 %v369
        %377 = vmatprep.subr.mxu0 0.0
        %378 = vmatpush1.xpose.msra.mxu0 %v370
        %379 = vmatprep.subr.mxu0 0.0
        %380 = vmatpush1.xpose.msra.mxu0 0.0
        %381 = vmatprep.subr.mxu0 0.0
        %382 = vmatpush1.xpose.msra.mxu0 0.0
        %383 = vmatprep.subr.mxu0 0.0
        %384 = vmatpush1.xpose.msra.mxu0 0.0
        %385 = vmatprep.subr.mxu0 0.0
        %386 = vmatpush1.xpose.msra.mxu0 0.0
        %387 = vmatprep.subr.mxu0 0.0
        %388 = vmatpush1.xpose.msra.mxu0 0.0
        %389 = vmatprep.subr.mxu0 0.0
        %390 = vmatpush1.xpose.msra.mxu0 0.0
        %391 = vmatprep.subr.mxu0 0.0
        %392 = vmatpush1.xpose.msra.mxu0 0.0
        %393 = vmatprep.subr.mxu0 0.0
        %394 = vmatpush1.xpose.msra.mxu0 0.0
        %395 = vmatprep.subr.mxu0 0.0
        %396 = vmatpush1.xpose.msra.mxu0 0.0
        %397 = vmatprep.subr.mxu0 0.0
        %398 = vmatpush1.xpose.msra.mxu0 0.0
        %399 = vmatprep.subr.mxu0 0.0
        %400 = vmatpush1.xpose.msra.mxu0 0.0
        %401 = vmatprep.subr.mxu0 0.0
        %402 = vmatpush1.xpose.msra.mxu0 0.0
        %403 = vmatprep.subr.mxu0 0.0
        %404 = vmatpush1.xpose.msra.mxu0 0.0
        %405 = vmatprep.subr.mxu0 0.0
        %406 = vmatpush1.xpose.msra.mxu0 0.0
        %407 = vmatprep.subr.mxu0 0.0
        %408 = vmatpush1.xpose.msra.mxu0 0.0
        %409 = vmatprep.subr.mxu0 0.0
        %410 = vmatpush1.xpose.msra.mxu0 0.0
        %411 = vmatprep.subr.mxu0 0.0
        %412 = vmatpush1.xpose.msra.mxu0 0.0
        %413 = vmatprep.subr.mxu0 0.0
        %414 = vmatpush1.xpose.msra.mxu0 0.0
        %415 = vmatprep.subr.mxu0 0.0
        %416 = vmatpush1.xpose.msra.mxu0 0.0
        %417 = vmatprep.subr.mxu0 0.0
        %418 = vmatpush1.xpose.msra.mxu0 0.0
        %419 = vmatprep.subr.mxu0 0.0
        %420 = vmatpush1.xpose.msra.mxu0 0.0
        %421 = vmatprep.subr.mxu0 0.0
        %422 = vmatpush1.xpose.msra.mxu0 0.0
        %423 = vmatprep.subr.mxu0 0.0
        %424 = vmatpush1.xpose.msra.mxu0 0.0
        %425 = vmatprep.subr.mxu0 0.0
        %426 = vmatpush1.xpose.msra.mxu0 0.0
        %427 = vmatprep.subr.mxu0 0.0
        %428 = vmatpush1.xpose.msra.mxu0 0.0
        %429 = vmatprep.subr.mxu0 0.0
        %430 = vmatpush1.xpose.msra.mxu0 0.0
        %431 = vmatprep.subr.mxu0 0.0
        %432 = vmatpush1.xpose.msra.mxu0 0.0
        %433 = vmatprep.subr.mxu0 0.0
        %434 = vmatpush1.xpose.msra.mxu0 0.0
        %435 = vmatprep.mubr.f32.mxu0 0.0
        %436 = vmatmul.mubr.f32.gmra.mrb[0].mxu0 %v359
        %v437 = vpop.f32.mrb[0].mxu0
        %v438 = vadd.f32 0.0, %v437
        %v439 = vpop.f32.mrb[0].mxu0
        %440 = vdwg.mxu0
        %v441 = vld [vmem:[%s297] sm:$0xff]
        %443 = vset.pattern.permute.xlu0 0
        %444 = vperm.xlu0 %443, %v351
        %v445 = vpop.permute.xlu0 %444
        %v447 = vmul.f32 %v445, %v441
        %v448 = vadd.f32 %v447, %v438
        %vm449 = vcmask 261120
        %450 = vst.msk [vmem:[%s297] sm:$0xff] %vm449, %v448
        %451 = vst.msk [vmem:[%s326] sm:$0xff] %vm365, %v348
        %s452 = sand.u32 %s118, 1
        %s453 = scalar_lea.sflag [#allocation4], %s452
        %s454 = sand.u32 %s118, 1
        %s455 = smul.addr %s454, 8
        %s456 = scalar_lea.vmem [#allocation7], %s455
        %p457 = scmp.lt.s32.totalorder %s30, 1
        %s458 = scalar_select %p457, %s30, 1
        %p459 = scmp.lt.s32.totalorder %s31, 0
        %s460 = scalar_select %p459, %s31, 0
        %s461 = sadd.s32 %s460, %s458
        %s462 = smul.addr %s461, 8
        %s463 = scalar_lea.vmem %s3, %s462
        %p464 = scmp.lt.s32.totalorder %s30, 1
        %s465 = scalar_select %p464, %s30, 1
        %p466 = scmp.lt.s32.totalorder %s31, 0
        %s467 = scalar_select %p466, %s31, 0
        %s468 = sadd.s32 %s467, %s465
        %s469 = smul.addr %s468, 8
        %s470 = scalar_lea.vmem %s4, %s469
        // Predicated region
        $region41: #{tpu_custom_call.1} parent=27 // pred_check
          %p471 = pneg %p128
        $region42: #{tpu_custom_call.1} parent=27 // pred_check_branch
          %473 = sbr.rel (%p471) target = $region44
        $region43: #{tpu_custom_call.1} parent=27 // pred_region
          %s475 = ssub.s32 128, 128
          %476 = vsyncadd %s453, %s475
          %s477 = sadd.s32 %s31, %s30
          %s478 = smul.addr %s477, 128
          %s479 = scalar_lea.hbm %s2, %s478
          %s481 = sshll.u32 %s456, 4
          %s482 = int_to_ptr.vmem [resolvable:$true] %s481
          %484 = dma.vmem_to_hbm [thread:$0]  %s482, 128, %s479, %s453
        $region44: #{tpu_custom_call.1} parent=27 // pred_fallthru
          _
        // Predicated region
        $region45: #{tpu_custom_call.1} parent=27 // pred_check
          %p485 = pneg %p156
        $region46: #{tpu_custom_call.1} parent=27 // pred_check_branch
          %487 = sbr.rel (%p485) target = $region48
        $region47: #{tpu_custom_call.1} parent=27 // pred_region
          _
        $region48: #{tpu_custom_call.1} parent=27 // pred_fallthru
          _
        // Predicated region
        $region49: #{tpu_custom_call.1} parent=27 // pred_check
          %p488 = pneg %p184
        $region50: #{tpu_custom_call.1} parent=27 // pred_check_branch
          %490 = sbr.rel (%p488) target = $region52
        $region51: #{tpu_custom_call.1} parent=27 // pred_region
          _
        $region52: #{tpu_custom_call.1} parent=27 // pred_fallthru
          _
      $region28: #{tpu_custom_call.1} parent=5 // pred_fallthru
        _
      %p491 = scmp.le.s32.totalorder 2, %s20
      // Predicated region
      $region53: #{tpu_custom_call.1} parent=5 // pred_check
        %p492 = pneg %p491
      $region54: #{tpu_custom_call.1} parent=5 // pred_check_branch
        %494 = sbr.rel (%p492) target = $region56
      $region55: #{tpu_custom_call.1} parent=5 // pred_region
        %s495 = ssub.s32 %s20, 2
        // Predicated region
        $region57: #{tpu_custom_call.1} parent=55 // pred_check
          %p496 = pneg %p134
        $region58: #{tpu_custom_call.1} parent=55 // pred_check_branch
          %498 = sbr.rel (%p496) target = $region60
        $region59: #{tpu_custom_call.1} parent=55 // pred_region
          %s499 = sand.u32 %s119, 1
          %s500 = scalar_lea.sflag [#allocation4], %s499
          %s501 = sand.u32 %s119, 1
          %s502 = smul.addr %s501, 8
          %s503 = scalar_lea.vmem [#allocation7], %s502
          %504 = dma.done %s500, 128
        $region60: #{tpu_custom_call.1} parent=55 // pred_fallthru
          _
        // Predicated region
        $region61: #{tpu_custom_call.1} parent=55 // pred_check
          %p505 = pneg %p162
        $region62: #{tpu_custom_call.1} parent=55 // pred_check_branch
          %507 = sbr.rel (%p505) target = $region64
        $region63: #{tpu_custom_call.1} parent=55 // pred_region
          %p508 = scmp.lt.s32.totalorder %s33, 1
          %s509 = scalar_select %p508, %s33, 1
          %p510 = scmp.lt.s32.totalorder %s34, 0
          %s511 = scalar_select %p510, %s34, 0
          %s512 = sadd.s32 %s511, %s509
          %s513 = smul.addr %s512, 8
          %s514 = scalar_lea.vmem %s3, %s513
        $region64: #{tpu_custom_call.1} parent=55 // pred_fallthru
          _
        // Predicated region
        $region65: #{tpu_custom_call.1} parent=55 // pred_check
          %p515 = pneg %p190
        $region66: #{tpu_custom_call.1} parent=55 // pred_check_branch
          %517 = sbr.rel (%p515) target = $region68
        $region67: #{tpu_custom_call.1} parent=55 // pred_region
          %p518 = scmp.lt.s32.totalorder %s33, 1
          %s519 = scalar_select %p518, %s33, 1
          %p520 = scmp.lt.s32.totalorder %s34, 0
          %s521 = scalar_select %p520, %s34, 0
          %s522 = sadd.s32 %s521, %s519
          %s523 = smul.addr %s522, 8
          %s524 = scalar_lea.vmem %s4, %s523
        $region68: #{tpu_custom_call.1} parent=55 // pred_fallthru
          _
      $region56: #{tpu_custom_call.1} parent=5 // pred_fallthru
        _
    $region6: #{tpu_custom_call.1} parent=1 // loop_footer
      %s24 = sadd.s32 1, %s20
    $region7: #{tpu_custom_call.1} parent=1 // loop_footer_branch
      %19 = sbr.rel target = $region3
    $region8: #{tpu_custom_call.1} parent=1 // loop_exit
      _
    %525 = vsyncpa [#allocation3], 1
    %s526 = scalar_lea.sflag [#allocation3], 1
    %527 = vsyncpa %s526, 1
    %528 = vsyncpa [#allocation6], 1
    %s529 = scalar_lea.sflag [#allocation6], 1
    %530 = vsyncpa %s529, 1
    %531 = vsyncpa [#allocation4], 1
    %s532 = scalar_lea.sflag [#allocation4], 1
    %533 = vsyncpa %s532, 1

</llo_original>
